<compile_context>
chip_gen: v7x
topology: tpu7x:2x2x1
jax: 0.10.0
libtpu: 0.0.40
codegen_flags: <defaults>
</compile_context>

<pallas_src>
import functools

import jax
import jax.numpy as jnp
from jax.experimental import pallas as pl
from jax.experimental.pallas import tpu as pltpu


# ----------------------------------------------------------------------------
# Static packing layout for the fused weight / bias buffers.
# ----------------------------------------------------------------------------
def _round_up(v, m):
    return (v + m - 1) // m * m


def _layout(n_in, n_tasks, dim_z, h1, h2):
    n_head = n_tasks + 2 * dim_z      # fused encoder head: [alpha | mu | logvar]
    n_dec_in = n_tasks + dim_z        # fused decoder input: [alpha | z]
    # (rows_in, cols_out) of each linear layer, in forward order.
    shapes = (
        (n_in, h1),        # encoder layer 1
        (h1, h2),          # encoder layer 2
        (h2, n_head),      # encoder head (fused alpha/mu/logvar)
        (n_dec_in, h2),    # decoder layer 1 (fused [alpha, z] input)
        (h2, h1),          # decoder layer 2
        (h1, n_in),        # decoder output
    )
    max_out = max(s[1] for s in shapes)
    row_off, r = [], 0
    for rin, _ in shapes:
        row_off.append(r)
        r += _round_up(rin, 8)         # 8-sublane-aligned block starts
    total_rows = _round_up(r, 8)
    return shapes, tuple(row_off), max_out, total_rows, n_head, n_dec_in


def pack_params(params, *, n_in, n_tasks, dim_z, enc_layers):
    """Pack all weights into one bf16 buffer and all biases into one f32 buffer.

    Called ONCE at setup; the jitted forward consumes the packed buffers.
    """
    h1, h2 = enc_layers
    shapes, row_off, max_out, total_rows, _, _ = _layout(
        n_in, n_tasks, dim_z, h1, h2)
    w_keys = ("w1", "w2", "w3", "d1", "d2", "d3")
    b_keys = ("b1", "b2", "b3", "c1", "c2", "c3")
    W = jnp.zeros((total_rows, max_out), jnp.bfloat16)
    B = jnp.zeros((8, max_out), jnp.float32)
    for i, ((rin, rout), wk, bk) in enumerate(zip(shapes, w_keys, b_keys)):
        W = W.at[row_off[i]:row_off[i] + rin, 0:rout].set(
            params[wk].astype(jnp.bfloat16))
        B = B.at[i, 0:rout].set(params[bk].astype(jnp.float32))
    return W, B


# ----------------------------------------------------------------------------
# Pallas kernel: whole encoder -> reparametrize -> decoder hot path.
# ----------------------------------------------------------------------------
def _recognition_kernel(x_ref, eps_ref, w_ref, b_ref, out_ref, *,
                        shapes, row_off, n_alpha, dim_z):
    f32 = jnp.float32
    bf16 = jnp.bfloat16
    n_head = n_alpha + 2 * dim_z

    def layer(act, idx):
        rin, rout = shapes[idx]
        r0 = row_off[idx]
        w = w_ref[r0:r0 + rin, 0:rout]          # static slice of packed bf16 weights
        b = b_ref[idx:idx + 1, 0:rout]          # static slice of packed f32 biases
        # bf16 MXU inputs, f32 accumulation; VPU-side math stays f32.
        return jnp.dot(act.astype(bf16), w, preferred_element_type=f32) + b

    x = x_ref[...]

    # ---- encoder hidden layers (ReLU) ----
    h = jnp.maximum(layer(x, 0), 0.0)
    h = jnp.maximum(layer(h, 1), 0.0)

    # ---- fused encoder head -> static lane slices into alpha / mu / logvar ----
    head = layer(h, 2)
    h_alpha = head[:, 0:n_alpha]
    mu_z = head[:, n_alpha:n_alpha + dim_z]
    logvar_z = head[:, n_alpha + dim_z:n_head]

    # ---- softmax over task dimension (dim=1) ----
    m = jnp.max(h_alpha, axis=-1, keepdims=True)
    e = jnp.exp(h_alpha - m)
    alpha = e * pl.reciprocal(jnp.sum(e, axis=-1, keepdims=True), approx=True)

    # ---- reparametrization trick: z = mu + exp(0.5*logvar) * eps ----
    z = mu_z + jnp.exp(0.5 * logvar_z) * eps_ref[...]

    # ---- decoder: single fused matmul on concat([alpha, z]) ----
    dec_in = jnp.concatenate([alpha, z], axis=-1)
    g = jnp.maximum(layer(dec_in, 3), 0.0)
    g = jnp.maximum(layer(g, 4), 0.0)
    out_ref[...] = layer(g, 5).astype(out_ref.dtype)


# ----------------------------------------------------------------------------
# Wrapper: batch-tiled grid, VMEM-resident packed weights, parallel grid axis.
# ----------------------------------------------------------------------------
@functools.partial(
    jax.jit,
    static_argnames=("n_in", "n_tasks", "dim_z", "enc_layers", "block_b"))
def recognition_net_forward(x, eps, W, Bias, *, n_in, n_tasks, dim_z=8,
                            enc_layers=(10, 10), block_b=512):
    """x: [B, n_in] f32, eps: [B, dim_z] f32, W/Bias: packed param buffers."""
    h1, h2 = enc_layers
    shapes, row_off, max_out, total_rows, _, _ = _layout(
        n_in, n_tasks, dim_z, h1, h2)

    batch = x.shape[0]
    block_b = min(block_b, batch)            # full-array block when batch is tiny
    grid = (pl.cdiv(batch, block_b),)

    kernel = functools.partial(
        _recognition_kernel,
        shapes=shapes, row_off=row_off, n_alpha=n_tasks, dim_z=dim_z)

    x_spec = pl.BlockSpec((block_b, n_in), lambda i: (i, 0))
    eps_spec = pl.BlockSpec((block_b, dim_z), lambda i: (i, 0))
    # Constant index_maps -> packed weights/biases stay VMEM-resident across steps.
    w_spec = pl.BlockSpec((total_rows, max_out), lambda i: (0, 0))
    b_spec = pl.BlockSpec((8, max_out), lambda i: (0, 0))
    out_spec = pl.BlockSpec((block_b, n_in), lambda i: (i, 0))

    return pl.pallas_call(
        kernel,
        out_shape=jax.ShapeDtypeStruct((batch, n_in), jnp.float32),
        grid_spec=pltpu.PrefetchScalarGridSpec(
            num_scalar_prefetch=0,
            grid=grid,
            in_specs=[x_spec, eps_spec, w_spec, b_spec],
            out_specs=out_spec,
        ),
        compiler_params=pltpu.CompilerParams(
            dimension_semantics=("parallel",)),   # shards batch grid over TCs
    )(x, eps, W, Bias)


# ----------------------------------------------------------------------------
# Deterministic parameter construction (synthetic init; shapes follow
# RecognitionNet(n_in, n_tasks, dim_z=8, enc_layers=[10, 10])).
# Weights are stored pre-transposed to [in, out]; head / decoder-input weights
# are stored already fused (equivalent to the PyTorch split layers).
# ----------------------------------------------------------------------------
def make_params(key, n_in, n_tasks, dim_z, enc_layers):
    h1, h2 = enc_layers
    n_head = n_tasks + 2 * dim_z
    n_dec_in = n_tasks + dim_z

    def init(k, shape, scale=0.2):
        return scale * jax.random.normal(k, shape, dtype=jnp.float32)

    keys = jax.random.split(key, 12)
    return {
        "w1": init(keys[0], (n_in, h1)),      "b1": init(keys[1], (h1,)),
        "w2": init(keys[2], (h1, h2)),        "b2": init(keys[3], (h2,)),
        "w3": init(keys[4], (h2, n_head)),    "b3": init(keys[5], (n_head,)),
        "d1": init(keys[6], (n_dec_in, h2)),  "c1": init(keys[7], (h2,)),
        "d2": init(keys[8], (h2, h1)),        "c2": init(keys[9], (h1,)),
        "d3": init(keys[10], (h1, n_in)),     "c3": jnp.zeros((n_in,), jnp.float32),
    }


# Pure-JAX reference of the same forward pass (mirrors the kernel's bf16 MXU
# inputs / f32 accumulation so the comparison is tight).
def ref_forward(x, eps, p, n_tasks, dim_z):
    bf16 = jnp.bfloat16

    def lin(a, w, b):
        return jnp.dot(a.astype(bf16), w.astype(bf16),
                       preferred_element_type=jnp.float32) + b

    h = jnp.maximum(lin(x, p["w1"], p["b1"]), 0.0)
    h = jnp.maximum(lin(h, p["w2"], p["b2"]), 0.0)
    head = lin(h, p["w3"], p["b3"])
    h_alpha = head[:, :n_tasks]
    mu = head[:, n_tasks:n_tasks + dim_z]
    logvar = head[:, n_tasks + dim_z:]
    alpha = jax.nn.softmax(h_alpha, axis=1)
    z = mu + jnp.exp(0.5 * logvar) * eps
    g = jnp.maximum(lin(jnp.concatenate([alpha, z], axis=1), p["d1"], p["c1"]), 0.0)
    g = jnp.maximum(lin(g, p["d2"], p["c2"]), 0.0)
    return lin(g, p["d3"], p["c3"])


if __name__ == "__main__":
    # Small shapes consistent with the module: x is a flat feature vector.
    batch, n_in, n_tasks, dim_z = 2, 32, 4, 8
    enc_layers = (10, 10)

    root = jax.random.PRNGKey(0)
    k_param, k_x, k_eps = jax.random.split(root, 3)
    params = make_params(k_param, n_in, n_tasks, dim_z, enc_layers)

    # Pack weights/biases ONCE (outside the jitted forward).
    W, Bias = pack_params(params, n_in=n_in, n_tasks=n_tasks, dim_z=dim_z,
                          enc_layers=enc_layers)

    # --- small-batch run (batch=2 -> single full-array block) ---
    x = jax.random.normal(k_x, (batch, n_in), dtype=jnp.float32)
    eps = jax.random.normal(k_eps, (batch, dim_z), dtype=jnp.float32)  # rsample noise
    x_rec = recognition_net_forward(x, eps, W, Bias, n_in=n_in, n_tasks=n_tasks,
                                    dim_z=dim_z, enc_layers=enc_layers)
    jax.block_until_ready(x_rec)
    ref = ref_forward(x, eps, params, n_tasks, dim_z)
    assert x_rec.shape == (batch, n_in)
    # bf16 matmul inputs + approx reciprocal -> relaxed tolerance vs pure f32.
    assert jnp.allclose(x_rec, ref, atol=2e-2, rtol=2e-2)

    # --- larger batch exercises the batch grid / pipelined, parallel path ---
    big_b = 1024
    kx2, ke2 = jax.random.split(jax.random.PRNGKey(1))
    x2 = jax.random.normal(kx2, (big_b, n_in), dtype=jnp.float32)
    eps2 = jax.random.normal(ke2, (big_b, dim_z), dtype=jnp.float32)
    x_rec2 = recognition_net_forward(x2, eps2, W, Bias, n_in=n_in, n_tasks=n_tasks,
                                     dim_z=dim_z, enc_layers=enc_layers,
                                     block_b=256)
    jax.block_until_ready(x_rec2)
    ref2 = ref_forward(x2, eps2, params, n_tasks, dim_z)
    assert jnp.allclose(x_rec2, ref2, atol=2e-2, rtol=2e-2)

    print("KERNEL_OK")
</pallas_src>

<mosaic_0001>
module attributes {stable_mosaic.version = 11 : i64} {
  func.func @_recognition_kernel(%arg0: i32, %arg1: memref<2x32xf32, #tpu.memory_space<vmem>>, %arg2: memref<2x8xf32, #tpu.memory_space<vmem>>, %arg3: memref<112x32xbf16, #tpu.memory_space<vmem>>, %arg4: memref<8x32xf32, #tpu.memory_space<vmem>>, %arg5: memref<2x32xf32, #tpu.memory_space<vmem>>) attributes {dimension_semantics = [#tpu.dimension_semantics<parallel>], iteration_bounds = array<i64: 1>, scalar_prefetch = 0 : i64, scratch_operands = 0 : i64, tpu.core_type = #tpu.core_type<tc>, window_params = [{transform_indices = @transform_0, window_bounds = array<i64: 2, 32>}, {transform_indices = @transform_1, window_bounds = array<i64: 2, 8>}, {pipeline_mode = #tpu.pipeline_mode<synchronous>, transform_indices = @transform_2, window_bounds = array<i64: 112, 32>}, {pipeline_mode = #tpu.pipeline_mode<synchronous>, transform_indices = @transform_3, window_bounds = array<i64: 8, 32>}, {transform_indices = @transform_4, window_bounds = array<i64: 2, 32>}]} {
    %c0 = arith.constant 0 : index
    %c0_0 = arith.constant 0 : index
    %0 = vector.load %arg1[%c0, %c0_0] : memref<2x32xf32, #tpu.memory_space<vmem>>, vector<2x32xf32>
    %c0_1 = arith.constant 0 : index
    %c0_2 = arith.constant 0 : index
    %1 = vector.load %arg3[%c0_1, %c0_2] : memref<112x32xbf16, #tpu.memory_space<vmem>>, vector<32x10xbf16>
    %c0_3 = arith.constant 0 : index
    %c0_4 = arith.constant 0 : index
    %2 = vector.load %arg4[%c0_3, %c0_4] : memref<8x32xf32, #tpu.memory_space<vmem>>, vector<1x10xf32>
    %3 = arith.truncf %0 : vector<2x32xf32> to vector<2x32xbf16>
    %cst = arith.constant dense<0.000000e+00> : vector<2x10xf32>
    %4 = tpu.matmul %3, %1, %cst {dimension_numbers = #tpu.dot_dimension_numbers<[1], [0], [0], [1], [0, 0, 1, 1], [], []>} : vector<2x32xbf16>, vector<32x10xbf16>, vector<2x10xf32> -> vector<2x10xf32>
    %5 = vector.broadcast %2 : vector<1x10xf32> to vector<2x10xf32>
    %6 = arith.addf %4, %5 : vector<2x10xf32>
    %cst_5 = arith.constant 0.000000e+00 : f32
    %7 = vector.broadcast %cst_5 : f32 to vector<2x10xf32>
    %8 = arith.maximumf %6, %7 : vector<2x10xf32>
    %c32 = arith.constant 32 : index
    %c0_6 = arith.constant 0 : index
    %9 = vector.load %arg3[%c32, %c0_6] : memref<112x32xbf16, #tpu.memory_space<vmem>>, vector<10x10xbf16>
    %c1 = arith.constant 1 : index
    %c0_7 = arith.constant 0 : index
    %10 = vector.load %arg4[%c1, %c0_7] : memref<8x32xf32, #tpu.memory_space<vmem>>, vector<1x10xf32>
    %11 = arith.truncf %8 : vector<2x10xf32> to vector<2x10xbf16>
    %cst_8 = arith.constant dense<0.000000e+00> : vector<2x10xf32>
    %12 = tpu.matmul %11, %9, %cst_8 {dimension_numbers = #tpu.dot_dimension_numbers<[1], [0], [0], [1], [0, 0, 1, 1], [], []>} : vector<2x10xbf16>, vector<10x10xbf16>, vector<2x10xf32> -> vector<2x10xf32>
    %13 = vector.broadcast %10 : vector<1x10xf32> to vector<2x10xf32>
    %14 = arith.addf %12, %13 : vector<2x10xf32>
    %cst_9 = arith.constant 0.000000e+00 : f32
    %15 = vector.broadcast %cst_9 : f32 to vector<2x10xf32>
    %16 = arith.maximumf %14, %15 : vector<2x10xf32>
    %c48 = arith.constant 48 : index
    %c0_10 = arith.constant 0 : index
    %17 = vector.load %arg3[%c48, %c0_10] : memref<112x32xbf16, #tpu.memory_space<vmem>>, vector<10x20xbf16>
    %c2 = arith.constant 2 : index
    %c0_11 = arith.constant 0 : index
    %18 = vector.load %arg4[%c2, %c0_11] : memref<8x32xf32, #tpu.memory_space<vmem>>, vector<1x20xf32>
    %19 = arith.truncf %16 : vector<2x10xf32> to vector<2x10xbf16>
    %cst_12 = arith.constant dense<0.000000e+00> : vector<2x20xf32>
    %20 = tpu.matmul %19, %17, %cst_12 {dimension_numbers = #tpu.dot_dimension_numbers<[1], [0], [0], [1], [0, 0, 1, 1], [], []>} : vector<2x10xbf16>, vector<10x20xbf16>, vector<2x20xf32> -> vector<2x20xf32>
    %21 = vector.broadcast %18 : vector<1x20xf32> to vector<2x20xf32>
    %22 = arith.addf %20, %21 : vector<2x20xf32>
    %23 = vector.extract_strided_slice %22 {offsets = [0, 0], sizes = [2, 4], strides = [1, 1]} : vector<2x20xf32> to vector<2x4xf32>
    %24 = vector.extract_strided_slice %22 {offsets = [0, 4], sizes = [2, 8], strides = [1, 1]} : vector<2x20xf32> to vector<2x8xf32>
    %25 = vector.extract_strided_slice %22 {offsets = [0, 12], sizes = [2, 8], strides = [1, 1]} : vector<2x20xf32> to vector<2x8xf32>
    %cst_13 = arith.constant dense<0xFF800000> : vector<2xf32>
    %26 = vector.multi_reduction <maximumf>, %23, %cst_13 [1] : vector<2x4xf32> to vector<2xf32>
    %27 = vector.shape_cast %26 : vector<2xf32> to vector<2x1xf32>
    %28 = vector.broadcast %27 : vector<2x1xf32> to vector<2x4xf32>
    %29 = arith.subf %23, %28 : vector<2x4xf32>
    %30 = math.exp %29 : vector<2x4xf32>
    %cst_14 = arith.constant dense<0.000000e+00> : vector<2xf32>
    %31 = vector.multi_reduction <add>, %30, %cst_14 [1] : vector<2x4xf32> to vector<2xf32>
    %32 = vector.shape_cast %31 : vector<2xf32> to vector<2x1xf32>
    %33 = tpu.reciprocal %32 {approx = true} : vector<2x1xf32> -> vector<2x1xf32>
    %34 = vector.broadcast %33 : vector<2x1xf32> to vector<2x4xf32>
    %35 = arith.mulf %30, %34 : vector<2x4xf32>
    %cst_15 = arith.constant 5.000000e-01 : f32
    %36 = vector.broadcast %cst_15 : f32 to vector<2x8xf32>
    %37 = arith.mulf %36, %25 : vector<2x8xf32>
    %38 = math.exp %37 : vector<2x8xf32>
    %c0_16 = arith.constant 0 : index
    %c0_17 = arith.constant 0 : index
    %39 = vector.load %arg2[%c0_16, %c0_17] : memref<2x8xf32, #tpu.memory_space<vmem>>, vector<2x8xf32>
    %40 = arith.mulf %38, %39 : vector<2x8xf32>
    %41 = arith.addf %24, %40 : vector<2x8xf32>
    %42 = tpu.concatenate %35, %41 in 1 : vector<2x4xf32>, vector<2x8xf32> -> vector<2x12xf32>
    %c64 = arith.constant 64 : index
    %c0_18 = arith.constant 0 : index
    %43 = vector.load %arg3[%c64, %c0_18] : memref<112x32xbf16, #tpu.memory_space<vmem>>, vector<12x10xbf16>
    %c3 = arith.constant 3 : index
    %c0_19 = arith.constant 0 : index
    %44 = vector.load %arg4[%c3, %c0_19] : memref<8x32xf32, #tpu.memory_space<vmem>>, vector<1x10xf32>
    %45 = arith.truncf %42 : vector<2x12xf32> to vector<2x12xbf16>
    %cst_20 = arith.constant dense<0.000000e+00> : vector<2x10xf32>
    %46 = tpu.matmul %45, %43, %cst_20 {dimension_numbers = #tpu.dot_dimension_numbers<[1], [0], [0], [1], [0, 0, 1, 1], [], []>} : vector<2x12xbf16>, vector<12x10xbf16>, vector<2x10xf32> -> vector<2x10xf32>
    %47 = vector.broadcast %44 : vector<1x10xf32> to vector<2x10xf32>
    %48 = arith.addf %46, %47 : vector<2x10xf32>
    %cst_21 = arith.constant 0.000000e+00 : f32
    %49 = vector.broadcast %cst_21 : f32 to vector<2x10xf32>
    %50 = arith.maximumf %48, %49 : vector<2x10xf32>
    %c80 = arith.constant 80 : index
    %c0_22 = arith.constant 0 : index
    %51 = vector.load %arg3[%c80, %c0_22] : memref<112x32xbf16, #tpu.memory_space<vmem>>, vector<10x10xbf16>
    %c4 = arith.constant 4 : index
    %c0_23 = arith.constant 0 : index
    %52 = vector.load %arg4[%c4, %c0_23] : memref<8x32xf32, #tpu.memory_space<vmem>>, vector<1x10xf32>
    %53 = arith.truncf %50 : vector<2x10xf32> to vector<2x10xbf16>
    %cst_24 = arith.constant dense<0.000000e+00> : vector<2x10xf32>
    %54 = tpu.matmul %53, %51, %cst_24 {dimension_numbers = #tpu.dot_dimension_numbers<[1], [0], [0], [1], [0, 0, 1, 1], [], []>} : vector<2x10xbf16>, vector<10x10xbf16>, vector<2x10xf32> -> vector<2x10xf32>
    %55 = vector.broadcast %52 : vector<1x10xf32> to vector<2x10xf32>
    %56 = arith.addf %54, %55 : vector<2x10xf32>
    %cst_25 = arith.constant 0.000000e+00 : f32
    %57 = vector.broadcast %cst_25 : f32 to vector<2x10xf32>
    %58 = arith.maximumf %56, %57 : vector<2x10xf32>
    %c96 = arith.constant 96 : index
    %c0_26 = arith.constant 0 : index
    %59 = vector.load %arg3[%c96, %c0_26] : memref<112x32xbf16, #tpu.memory_space<vmem>>, vector<10x32xbf16>
    %c5 = arith.constant 5 : index
    %c0_27 = arith.constant 0 : index
    %60 = vector.load %arg4[%c5, %c0_27] : memref<8x32xf32, #tpu.memory_space<vmem>>, vector<1x32xf32>
    %61 = arith.truncf %58 : vector<2x10xf32> to vector<2x10xbf16>
    %cst_28 = arith.constant dense<0.000000e+00> : vector<2x32xf32>
    %62 = tpu.matmul %61, %59, %cst_28 {dimension_numbers = #tpu.dot_dimension_numbers<[1], [0], [0], [1], [0, 0, 1, 1], [], []>} : vector<2x10xbf16>, vector<10x32xbf16>, vector<2x32xf32> -> vector<2x32xf32>
    %63 = vector.broadcast %60 : vector<1x32xf32> to vector<2x32xf32>
    %64 = arith.addf %62, %63 : vector<2x32xf32>
    %c0_29 = arith.constant 0 : index
    %c0_30 = arith.constant 0 : index
    %65 = vector.load %arg5[%c0_29, %c0_30] : memref<2x32xf32, #tpu.memory_space<vmem>>, vector<2x32xf32>
    tpu.vector_store %arg5[%c0_29, %c0_30], %64 {strides = array<i32>} : memref<2x32xf32, #tpu.memory_space<vmem>>, vector<2x32xf32>,
    return
  }
  func.func @transform_0(%arg0: i32) -> (i32, i32) {
    %c0_i32 = arith.constant 0 : i32
    %c0_i32_0 = arith.constant 0 : i32
    return %arg0, %c0_i32 : i32, i32
  }
  func.func @transform_1(%arg0: i32) -> (i32, i32) {
    %c0_i32 = arith.constant 0 : i32
    %c0_i32_0 = arith.constant 0 : i32
    return %arg0, %c0_i32 : i32, i32
  }
  func.func @transform_2(%arg0: i32) -> (i32, i32) {
    %c0_i32 = arith.constant 0 : i32
    %c0_i32_0 = arith.constant 0 : i32
    %c0_i32_1 = arith.constant 0 : i32
    return %c0_i32, %c0_i32_0 : i32, i32
  }
  func.func @transform_3(%arg0: i32) -> (i32, i32) {
    %c0_i32 = arith.constant 0 : i32
    %c0_i32_0 = arith.constant 0 : i32
    %c0_i32_1 = arith.constant 0 : i32
    return %c0_i32, %c0_i32_0 : i32, i32
  }
  func.func @transform_4(%arg0: i32) -> (i32, i32) {
    %c0_i32 = arith.constant 0 : i32
    %c0_i32_0 = arith.constant 0 : i32
    return %arg0, %c0_i32 : i32, i32
  }
}

</mosaic_0001>

<llo_original>
// kernel: recognition_net_forward.1
$region0: #{recognition_net_forward.1}
  #allocation0 [shape = 'u32[]', space=smem, size = 0x4, offset = 0x4, fixed_abs, tag = 'smem constant byte address 0x4 - core index']
  #allocation1 [shape = 'u32[144,128]{1,0:T(1,128)}', space=vmem, size = 0x12000, scoped, tag = 'internal scratch']
  %s0 = inlined_call_operand.vmem [shape: f32[2,32], index: 0, kind: input, shape index: {}]
  %s1 = inlined_call_operand.vmem [shape: f32[2,8], index: 1, kind: input, shape index: {}]
  %s2 = inlined_call_operand.vmem [shape: bf16[112,32], index: 2, kind: input, shape index: {}]
  %s3 = inlined_call_operand.vmem [shape: f32[8,32], index: 3, kind: input, shape index: {}]
  %s4 = inlined_call_operand.hbm [shape: f32[2,32], index: 4, kind: output, shape index: {}]
  %s5 = sld [smem:[#allocation0]]
  $region26: #{recognition_net_forward.1} parent=0
    _
  %s7 = ssub.s32 1, %s5
  %s8 = scalar_select 0, %s7, %s5
  $region1: #{recognition_net_forward.1} parent=0
    #allocation2 [shape = 'u8[1024]{0}', space=vmem, size = 0x400, scoped, tag = 'output window, operand 0, single buffered']
    #allocation3 [shape = 's32[1]{0}', space=sflag, size = 0x4, scoped, tag = 'scoped memory for recognition_net_forward.1']
    %9 = vsyncpa [#allocation3], 0
    // Predicated region
    $region2: #{recognition_net_forward.1} parent=1 // pred_check
      _
    $region3: #{recognition_net_forward.1} parent=1 // pred_check_branch
      %11 = sbr.rel (0) target = $region5
    $region4: #{recognition_net_forward.1} parent=1 // pred_region
      _
    $region5: #{recognition_net_forward.1} parent=1 // pred_fallthru
      _
    // Predicated region
    $region6: #{recognition_net_forward.1} parent=1 // pred_check
      _
    $region7: #{recognition_net_forward.1} parent=1 // pred_check_branch
      %13 = sbr.rel (0) target = $region9
    $region8: #{recognition_net_forward.1} parent=1 // pred_region
      _
    $region9: #{recognition_net_forward.1} parent=1 // pred_fallthru
      _
    // Predicated region
    $region10: #{recognition_net_forward.1} parent=1 // pred_check
      _
    $region11: #{recognition_net_forward.1} parent=1 // pred_check_branch
      %15 = sbr.rel (0) target = $region13
    $region12: #{recognition_net_forward.1} parent=1 // pred_region
      _
    $region13: #{recognition_net_forward.1} parent=1 // pred_fallthru
      _
    // Predicated region
    $region14: #{recognition_net_forward.1} parent=1 // pred_check
      _
    $region15: #{recognition_net_forward.1} parent=1 // pred_check_branch
      %17 = sbr.rel (0) target = $region17
    $region16: #{recognition_net_forward.1} parent=1 // pred_region
      _
    $region17: #{recognition_net_forward.1} parent=1 // pred_fallthru
      _
    %v19 = vld [vmem:[%s0] sm:$0x3]
    %v20 = vld [vmem:[%s2] sm:$0xf]
    %v21 = vld [vmem:[%s2 + $0x4] sm:$0xf]
    %v22 = vld [vmem:[%s2 + $0x8] sm:$0xf]
    %v23 = vld [vmem:[%s2 + $0xc] sm:$0xf]
    %v24 = vld [vmem:[%s3] sm:$0x1]
    %v25 = vpack.c.bf16 %v19, %v19
    %v26 = vlaneseq
    %v27 = vshrl.u32 %v26, 7
    %v28 = vsub.s32 0, %v27
    %v29 = vrot.slane %v24, %v28
    %v34 = vunpack.c.l.b16 %v20
    %v35 = vunpack.c.l.b16 %v21
    %v36 = vunpack.c.l.b16 %v22
    %v37 = vunpack.c.l.b16 %v23
    %v38 = vpack.c.b16 %v35, %v34
    %v39 = vpack.c.b16 %v37, %v36
    %vm42 = vcmask 261120
    %v44 = vsel %vm42, %v25, 0
    %46 = vmatprep.subr.bf16.mxu0 0
    %47 = vmatpush1.bf16.msra.mxu0 %v38
    %48 = vmatprep.subr.bf16.mxu0 0
    %49 = vmatpush1.bf16.msra.mxu0 %v39
    %50 = vmatprep.subr.bf16.mxu0 0
    %51 = vmatpush1.bf16.msra.mxu0 0
    %52 = vmatprep.subr.bf16.mxu0 0
    %53 = vmatpush1.bf16.msra.mxu0 0
    %54 = vmatprep.subr.bf16.mxu0 0
    %55 = vmatpush1.bf16.msra.mxu0 0
    %56 = vmatprep.subr.bf16.mxu0 0
    %57 = vmatpush1.bf16.msra.mxu0 0
    %58 = vmatprep.subr.bf16.mxu0 0
    %59 = vmatpush1.bf16.msra.mxu0 0
    %60 = vmatprep.subr.bf16.mxu0 0
    %61 = vmatpush1.bf16.msra.mxu0 0
    %62 = vmatprep.subr.bf16.mxu0 0
    %63 = vmatpush1.bf16.msra.mxu0 0
    %64 = vmatprep.subr.bf16.mxu0 0
    %65 = vmatpush1.bf16.msra.mxu0 0
    %66 = vmatprep.subr.bf16.mxu0 0
    %67 = vmatpush1.bf16.msra.mxu0 0
    %68 = vmatprep.subr.bf16.mxu0 0
    %69 = vmatpush1.bf16.msra.mxu0 0
    %70 = vmatprep.subr.bf16.mxu0 0
    %71 = vmatpush1.bf16.msra.mxu0 0
    %72 = vmatprep.subr.bf16.mxu0 0
    %73 = vmatpush1.bf16.msra.mxu0 0
    %74 = vmatprep.subr.bf16.mxu0 0
    %75 = vmatpush1.bf16.msra.mxu0 0
    %76 = vmatprep.subr.bf16.mxu0 0
    %77 = vmatpush1.bf16.msra.mxu0 0
    %78 = vmatprep.mubr.bf16.mxu0 0
    %79 = vmatmul.mubr.bf16.gmra.mrb[0].mxu0 %v44
    %v80 = vpop.f32.mrb[0].mxu0
    %v81 = vadd.f32 %v29, %v80
    %v82 = vpop.f32.mrb[0].mxu0
    %v83 = vpop.f32.mrb[0].mxu0
    %v84 = vpop.f32.mrb[0].mxu0
    %85 = vdwg.mxu0
    %v86 = vmax.f32 %v81, 0.0
    %v87 = vld [vmem:[%s2 + $0x10] sm:$0xf]
    %v88 = vld [vmem:[%s2 + $0x14] sm:$0x1]
    %v89 = vld [vmem:[%s3 + $0x1] sm:$0x1]
    %v90 = vpack.c.bf16 %v86, %v86
    %v91 = vlaneseq
    %v92 = vshrl.u32 %v91, 7
    %v93 = vsub.s32 0, %v92
    %v94 = vrot.slane %v89, %v93
    %v97 = vunpack.c.l.b16 %v87
    %v98 = vunpack.c.l.b16 %v88
    %v99 = vpack.c.b16 %v98, %v97
    %vm100 = vcmask 80896
    %v102 = vsel %vm100, %v90, 0
    %vm104 = vcmask 1044480
    %v106 = vsel %vm104, %v99, 0
    %108 = vmatprep.subr.bf16.mxu0 0
    %109 = vmatpush1.bf16.msra.mxu0 %v106
    %110 = vmatprep.subr.bf16.mxu0 0
    %111 = vmatpush1.bf16.msra.mxu0 0
    %112 = vmatprep.subr.bf16.mxu0 0
    %113 = vmatpush1.bf16.msra.mxu0 0
    %114 = vmatprep.subr.bf16.mxu0 0
    %115 = vmatpush1.bf16.msra.mxu0 0
    %116 = vmatprep.subr.bf16.mxu0 0
    %117 = vmatpush1.bf16.msra.mxu0 0
    %118 = vmatprep.subr.bf16.mxu0 0
    %119 = vmatpush1.bf16.msra.mxu0 0
    %120 = vmatprep.subr.bf16.mxu0 0
    %121 = vmatpush1.bf16.msra.mxu0 0
    %122 = vmatprep.subr.bf16.mxu0 0
    %123 = vmatpush1.bf16.msra.mxu0 0
    %124 = vmatprep.subr.bf16.mxu0 0
    %125 = vmatpush1.bf16.msra.mxu0 0
    %126 = vmatprep.subr.bf16.mxu0 0
    %127 = vmatpush1.bf16.msra.mxu0 0
    %128 = vmatprep.subr.bf16.mxu0 0
    %129 = vmatpush1.bf16.msra.mxu0 0
    %130 = vmatprep.subr.bf16.mxu0 0
    %131 = vmatpush1.bf16.msra.mxu0 0
    %132 = vmatprep.subr.bf16.mxu0 0
    %133 = vmatpush1.bf16.msra.mxu0 0
    %134 = vmatprep.subr.bf16.mxu0 0
    %135 = vmatpush1.bf16.msra.mxu0 0
    %136 = vmatprep.subr.bf16.mxu0 0
    %137 = vmatpush1.bf16.msra.mxu0 0
    %138 = vmatprep.subr.bf16.mxu0 0
    %139 = vmatpush1.bf16.msra.mxu0 0
    %140 = vmatprep.mubr.bf16.mxu0 0
    %141 = vmatmul.mubr.bf16.gmra.mrb[0].mxu0 %v102
    %v142 = vpop.f32.mrb[0].mxu0
    %v143 = vadd.f32 %v94, %v142
    %v144 = vpop.f32.mrb[0].mxu0
    %v145 = vpop.f32.mrb[0].mxu0
    %v146 = vpop.f32.mrb[0].mxu0
    %147 = vdwg.mxu0
    %v148 = vmax.f32 %v143, 0.0
    %v149 = vld [vmem:[%s2 + $0x18] sm:$0xf]
    %v150 = vld [vmem:[%s2 + $0x1c] sm:$0x1]
    %v151 = vld [vmem:[%s3 + $0x2] sm:$0x1]
    %v152 = vpack.c.bf16 %v148, %v148
    %v153 = vlaneseq
    %v154 = vshrl.u32 %v153, 7
    %v155 = vsub.s32 0, %v154
    %v156 = vrot.slane %v151, %v155
    %v159 = vunpack.c.l.b16 %v149
    %v160 = vunpack.c.l.b16 %v150
    %v161 = vpack.c.b16 %v160, %v159
    %v163 = vsel %vm100, %v152, 0
    %v166 = vsel %vm104, %v161, 0
    %168 = vmatprep.subr.bf16.mxu0 0
    %169 = vmatpush1.bf16.msra.mxu0 %v166
    %170 = vmatprep.subr.bf16.mxu0 0
    %171 = vmatpush1.bf16.msra.mxu0 0
    %172 = vmatprep.subr.bf16.mxu0 0
    %173 = vmatpush1.bf16.msra.mxu0 0
    %174 = vmatprep.subr.bf16.mxu0 0
    %175 = vmatpush1.bf16.msra.mxu0 0
    %176 = vmatprep.subr.bf16.mxu0 0
    %177 = vmatpush1.bf16.msra.mxu0 0
    %178 = vmatprep.subr.bf16.mxu0 0
    %179 = vmatpush1.bf16.msra.mxu0 0
    %180 = vmatprep.subr.bf16.mxu0 0
    %181 = vmatpush1.bf16.msra.mxu0 0
    %182 = vmatprep.subr.bf16.mxu0 0
    %183 = vmatpush1.bf16.msra.mxu0 0
    %184 = vmatprep.subr.bf16.mxu0 0
    %185 = vmatpush1.bf16.msra.mxu0 0
    %186 = vmatprep.subr.bf16.mxu0 0
    %187 = vmatpush1.bf16.msra.mxu0 0
    %188 = vmatprep.subr.bf16.mxu0 0
    %189 = vmatpush1.bf16.msra.mxu0 0
    %190 = vmatprep.subr.bf16.mxu0 0
    %191 = vmatpush1.bf16.msra.mxu0 0
    %192 = vmatprep.subr.bf16.mxu0 0
    %193 = vmatpush1.bf16.msra.mxu0 0
    %194 = vmatprep.subr.bf16.mxu0 0
    %195 = vmatpush1.bf16.msra.mxu0 0
    %196 = vmatprep.subr.bf16.mxu0 0
    %197 = vmatpush1.bf16.msra.mxu0 0
    %198 = vmatprep.subr.bf16.mxu0 0
    %199 = vmatpush1.bf16.msra.mxu0 0
    %200 = vmatprep.mubr.bf16.mxu0 0
    %201 = vmatmul.mubr.bf16.gmra.mrb[0].mxu0 %v163
    %v202 = vpop.f32.mrb[0].mxu0
    %v203 = vadd.f32 %v156, %v202
    %v204 = vpop.f32.mrb[0].mxu0
    %v205 = vpop.f32.mrb[0].mxu0
    %v206 = vpop.f32.mrb[0].mxu0
    %207 = vdwg.mxu0
    %vm208 = vcmask 25600
    %v209 = vsel %vm208, %v203, -inf
    %210 = vmax.xlane.f32.xlu0 %v209
    %v211 = vpop.xlane.xlu0 %210
    %v212 = vsub.f32 %v203, %v211
    %v213 = vmul.f32 %v212, 1.442695
    %v214 = vpow.pop %v213
    %v215 = vsel %vm208, %v214, 0.0
    %216 = vadd.xlane.f32.xlu0 %v215
    %v217 = vpop.xlane.xlu0 %216
    %v218 = vrcp.pop %v217
    %v219 = vmul.f32 %v214, %v218
    %v220 = vmul.f32 %v203, 0.5
    %v221 = vmul.f32 %v220, 1.442695
    %v222 = vpow.pop %v221
    %v223 = vld [vmem:[%s1] sm:$0x3]
    %225 = vrot.lane.b32.xlu0 %v223, 12
    %v226 = vpop.permute.xlu0 %225
    %v228 = vmul.f32 %v222, %v226
    %230 = vrot.lane.b32.xlu0 %v228, 120
    %v231 = vpop.permute.xlu0 %230
    %v233 = vadd.f32 %v203, %v231
    %vm234 = vcmask 31744
    %v235 = vsel %vm234, %v219, %v233
    %v236 = vld [vmem:[%s2 + $0x20] sm:$0xf]
    %v237 = vld [vmem:[%s2 + $0x24] sm:$0x3]
    %v238 = vld [vmem:[%s3 + $0x3] sm:$0x1]
    %v239 = vpack.c.bf16 %v235, %v235
    %v240 = vlaneseq
    %v241 = vshrl.u32 %v240, 7
    %v242 = vsub.s32 0, %v241
    %v243 = vrot.slane %v238, %v242
    %v246 = vunpack.c.l.b16 %v236
    %v247 = vunpack.c.l.b16 %v237
    %v248 = vpack.c.b16 %v247, %v246
    %vm249 = vcmask 97280
    %v251 = vsel %vm249, %v239, 0
    %vm253 = vcmask 1045504
    %v255 = vsel %vm253, %v248, 0
    %257 = vmatprep.subr.bf16.mxu0 0
    %258 = vmatpush1.bf16.msra.mxu0 %v255
    %259 = vmatprep.subr.bf16.mxu0 0
    %260 = vmatpush1.bf16.msra.mxu0 0
    %261 = vmatprep.subr.bf16.mxu0 0
    %262 = vmatpush1.bf16.msra.mxu0 0
    %263 = vmatprep.subr.bf16.mxu0 0
    %264 = vmatpush1.bf16.msra.mxu0 0
    %265 = vmatprep.subr.bf16.mxu0 0
    %266 = vmatpush1.bf16.msra.mxu0 0
    %267 = vmatprep.subr.bf16.mxu0 0
    %268 = vmatpush1.bf16.msra.mxu0 0
    %269 = vmatprep.subr.bf16.mxu0 0
    %270 = vmatpush1.bf16.msra.mxu0 0
    %271 = vmatprep.subr.bf16.mxu0 0
    %272 = vmatpush1.bf16.msra.mxu0 0
    %273 = vmatprep.subr.bf16.mxu0 0
    %274 = vmatpush1.bf16.msra.mxu0 0
    %275 = vmatprep.subr.bf16.mxu0 0
    %276 = vmatpush1.bf16.msra.mxu0 0
    %277 = vmatprep.subr.bf16.mxu0 0
    %278 = vmatpush1.bf16.msra.mxu0 0
    %279 = vmatprep.subr.bf16.mxu0 0
    %280 = vmatpush1.bf16.msra.mxu0 0
    %281 = vmatprep.subr.bf16.mxu0 0
    %282 = vmatpush1.bf16.msra.mxu0 0
    %283 = vmatprep.subr.bf16.mxu0 0
    %284 = vmatpush1.bf16.msra.mxu0 0
    %285 = vmatprep.subr.bf16.mxu0 0
    %286 = vmatpush1.bf16.msra.mxu0 0
    %287 = vmatprep.subr.bf16.mxu0 0
    %288 = vmatpush1.bf16.msra.mxu0 0
    %289 = vmatprep.mubr.bf16.mxu0 0
    %290 = vmatmul.mubr.bf16.gmra.mrb[0].mxu0 %v251
    %v291 = vpop.f32.mrb[0].mxu0
    %v292 = vadd.f32 %v243, %v291
    %v293 = vpop.f32.mrb[0].mxu0
    %v294 = vpop.f32.mrb[0].mxu0
    %v295 = vpop.f32.mrb[0].mxu0
    %296 = vdwg.mxu0
    %v297 = vmax.f32 %v292, 0.0
    %v298 = vld [vmem:[%s2 + $0x28] sm:$0xf]
    %v299 = vld [vmem:[%s2 + $0x2c] sm:$0x1]
    %v300 = vld [vmem:[%s3 + $0x4] sm:$0x1]
    %v301 = vpack.c.bf16 %v297, %v297
    %v302 = vlaneseq
    %v303 = vshrl.u32 %v302, 7
    %v304 = vsub.s32 0, %v303
    %v305 = vrot.slane %v300, %v304
    %v308 = vunpack.c.l.b16 %v298
    %v309 = vunpack.c.l.b16 %v299
    %v310 = vpack.c.b16 %v309, %v308
    %v312 = vsel %vm100, %v301, 0
    %v315 = vsel %vm104, %v310, 0
    %317 = vmatprep.subr.bf16.mxu0 0
    %318 = vmatpush1.bf16.msra.mxu0 %v315
    %319 = vmatprep.subr.bf16.mxu0 0
    %320 = vmatpush1.bf16.msra.mxu0 0
    %321 = vmatprep.subr.bf16.mxu0 0
    %322 = vmatpush1.bf16.msra.mxu0 0
    %323 = vmatprep.subr.bf16.mxu0 0
    %324 = vmatpush1.bf16.msra.mxu0 0
    %325 = vmatprep.subr.bf16.mxu0 0
    %326 = vmatpush1.bf16.msra.mxu0 0
    %327 = vmatprep.subr.bf16.mxu0 0
    %328 = vmatpush1.bf16.msra.mxu0 0
    %329 = vmatprep.subr.bf16.mxu0 0
    %330 = vmatpush1.bf16.msra.mxu0 0
    %331 = vmatprep.subr.bf16.mxu0 0
    %332 = vmatpush1.bf16.msra.mxu0 0
    %333 = vmatprep.subr.bf16.mxu0 0
    %334 = vmatpush1.bf16.msra.mxu0 0
    %335 = vmatprep.subr.bf16.mxu0 0
    %336 = vmatpush1.bf16.msra.mxu0 0
    %337 = vmatprep.subr.bf16.mxu0 0
    %338 = vmatpush1.bf16.msra.mxu0 0
    %339 = vmatprep.subr.bf16.mxu0 0
    %340 = vmatpush1.bf16.msra.mxu0 0
    %341 = vmatprep.subr.bf16.mxu0 0
    %342 = vmatpush1.bf16.msra.mxu0 0
    %343 = vmatprep.subr.bf16.mxu0 0
    %344 = vmatpush1.bf16.msra.mxu0 0
    %345 = vmatprep.subr.bf16.mxu0 0
    %346 = vmatpush1.bf16.msra.mxu0 0
    %347 = vmatprep.subr.bf16.mxu0 0
    %348 = vmatpush1.bf16.msra.mxu0 0
    %349 = vmatprep.mubr.bf16.mxu0 0
    %350 = vmatmul.mubr.bf16.gmra.mrb[0].mxu0 %v312
    %v351 = vpop.f32.mrb[0].mxu0
    %v352 = vadd.f32 %v305, %v351
    %v353 = vpop.f32.mrb[0].mxu0
    %v354 = vpop.f32.mrb[0].mxu0
    %v355 = vpop.f32.mrb[0].mxu0
    %356 = vdwg.mxu0
    %v357 = vmax.f32 %v352, 0.0
    %v358 = vld [vmem:[%s2 + $0x30] sm:$0xf]
    %v359 = vld [vmem:[%s2 + $0x34] sm:$0x1]
    %v360 = vld [vmem:[%s3 + $0x5] sm:$0x1]
    %v361 = vpack.c.bf16 %v357, %v357
    %v362 = vlaneseq
    %v363 = vshrl.u32 %v362, 7
    %v364 = vsub.s32 0, %v363
    %v365 = vrot.slane %v360, %v364
    %v368 = vunpack.c.l.b16 %v358
    %v369 = vunpack.c.l.b16 %v359
    %v370 = vpack.c.b16 %v369, %v368
    %v372 = vsel %vm100, %v361, 0
    %v375 = vsel %vm104, %v370, 0
    %377 = vmatprep.subr.bf16.mxu0 0
    %378 = vmatpush1.bf16.msra.mxu0 %v375
    %379 = vmatprep.subr.bf16.mxu0 0
    %380 = vmatpush1.bf16.msra.mxu0 0
    %381 = vmatprep.subr.bf16.mxu0 0
    %382 = vmatpush1.bf16.msra.mxu0 0
    %383 = vmatprep.subr.bf16.mxu0 0
    %384 = vmatpush1.bf16.msra.mxu0 0
    %385 = vmatprep.subr.bf16.mxu0 0
    %386 = vmatpush1.bf16.msra.mxu0 0
    %387 = vmatprep.subr.bf16.mxu0 0
    %388 = vmatpush1.bf16.msra.mxu0 0
    %389 = vmatprep.subr.bf16.mxu0 0
    %390 = vmatpush1.bf16.msra.mxu0 0
    %391 = vmatprep.subr.bf16.mxu0 0
    %392 = vmatpush1.bf16.msra.mxu0 0
    %393 = vmatprep.subr.bf16.mxu0 0
    %394 = vmatpush1.bf16.msra.mxu0 0
    %395 = vmatprep.subr.bf16.mxu0 0
    %396 = vmatpush1.bf16.msra.mxu0 0
    %397 = vmatprep.subr.bf16.mxu0 0
    %398 = vmatpush1.bf16.msra.mxu0 0
    %399 = vmatprep.subr.bf16.mxu0 0
    %400 = vmatpush1.bf16.msra.mxu0 0
    %401 = vmatprep.subr.bf16.mxu0 0
    %402 = vmatpush1.bf16.msra.mxu0 0
    %403 = vmatprep.subr.bf16.mxu0 0
    %404 = vmatpush1.bf16.msra.mxu0 0
    %405 = vmatprep.subr.bf16.mxu0 0
    %406 = vmatpush1.bf16.msra.mxu0 0
    %407 = vmatprep.subr.bf16.mxu0 0
    %408 = vmatpush1.bf16.msra.mxu0 0
    %409 = vmatprep.mubr.bf16.mxu0 0
    %410 = vmatmul.mubr.bf16.gmra.mrb[0].mxu0 %v372
    %v411 = vpop.f32.mrb[0].mxu0
    %v412 = vadd.f32 %v365, %v411
    %v413 = vpop.f32.mrb[0].mxu0
    %v414 = vpop.f32.mrb[0].mxu0
    %v415 = vpop.f32.mrb[0].mxu0
    %416 = vdwg.mxu0
    %vm417 = vcmask 254976
    %418 = vst.msk [vmem:[#allocation2] sm:$0x3] %vm417, %v412
    // Predicated region
    $region18: #{recognition_net_forward.1} parent=1 // pred_check
      _
    $region19: #{recognition_net_forward.1} parent=1 // pred_check_branch
      %420 = sbr.rel (0) target = $region21
    $region20: #{recognition_net_forward.1} parent=1 // pred_region
      %s422 = ssub.s32 32, 32
      %423 = vsyncadd [#allocation3], %s422
      %s425 = sshll.u32 [#allocation2], 4
      %s426 = int_to_ptr.vmem [resolvable:$true] %s425
      %428 = dma.vmem_to_hbm [thread:$0]  %s426, 32, %s4, [#allocation3]
    $region21: #{recognition_net_forward.1} parent=1 // pred_fallthru
      _
    // Predicated region
    $region22: #{recognition_net_forward.1} parent=1 // pred_check
      _
    $region23: #{recognition_net_forward.1} parent=1 // pred_check_branch
      %430 = sbr.rel (0) target = $region25
    $region24: #{recognition_net_forward.1} parent=1 // pred_region
      %431 = dma.done [#allocation3], 32
    $region25: #{recognition_net_forward.1} parent=1 // pred_fallthru
      _
    %432 = vsyncpa [#allocation3], 1

</llo_original>
